<compile_context>
chip_gen: v5e
topology: v5e:2x2
jax: 0.10.0
libtpu: 0.0.40
codegen_flags: <defaults>
</compile_context>

<pallas_src>
import jax
import jax.numpy as jnp
from jax.experimental import pallas as pl
from jax.experimental.pallas import tpu as pltpu

IN_FEATURES = 5
OUT_FEATURES = 2


def _linear_relu_kernel(xT_ref, w_ref, b_ref, oT_ref):
    # xT_ref: (IN_FEATURES, TB) f32 in VMEM  -- batch on the lane axis.
    # w_ref:  (IN_FEATURES, OUT_FEATURES) f32 in SMEM (10 scalars).
    # b_ref:  (OUT_FEATURES,) f32 in SMEM (2 scalars).
    # oT_ref: (OUT_FEATURES, TB) f32 in VMEM -- lane-dense stores.
    x = xT_ref[...]                                   # (5, TB)
    rows = []
    for j in range(OUT_FEATURES):                     # static unroll: 2 units
        acc = x[0:1, :] * w_ref[0, j]                 # scalar-broadcast VPU mul
        for k in range(1, IN_FEATURES):               # static unroll: 4 FMAs
            acc = acc + x[k:k + 1, :] * w_ref[k, j]
        rows.append(acc + b_ref[j])
    y = jnp.concatenate(rows, axis=0)                 # (2, TB)
    oT_ref[...] = jnp.maximum(y, 0.0)                 # ReLU on the VPU


def net_forward(x, w, b, *, tb=512):
    """relu(x @ w + b), x: (B, 5) f32, w: (5, 2) f32, b: (2,) f32 -> (B, 2)."""
    B = x.shape[0]
    if B <= tb:
        tb = B            # single full-extent block (always layout-legal)
    # else: tb stays a multiple of 128; pl.cdiv + masked boundary block handles
    # any remainder (no cross-lane reduction over batch, so padding is inert).

    xT = x.T                                   # (5, B): batch on the lane axis
    grid = (pl.cdiv(B, tb),)

    cost = pl.CostEstimate(
        flops=2 * B * IN_FEATURES * OUT_FEATURES,
        transcendentals=0,
        bytes_accessed=4 * (B * IN_FEATURES + B * OUT_FEATURES
                            + IN_FEATURES * OUT_FEATURES + OUT_FEATURES),
    )

    outT = pl.pallas_call(
        _linear_relu_kernel,
        out_shape=jax.ShapeDtypeStruct((OUT_FEATURES, B), jnp.float32),
        grid_spec=pltpu.PrefetchScalarGridSpec(
            num_scalar_prefetch=0,
            grid=grid,
            in_specs=[
                # x^T tile: full feature extent (5), tb lanes of batch.
                pl.BlockSpec((IN_FEATURES, tb), lambda i: (0, i),
                             memory_space=pltpu.MemorySpace.VMEM),
                # 10 weight scalars + 2 bias scalars live in SMEM, untiled.
                pl.BlockSpec(memory_space=pltpu.MemorySpace.SMEM),
                pl.BlockSpec(memory_space=pltpu.MemorySpace.SMEM),
            ],
            out_specs=pl.BlockSpec((OUT_FEATURES, tb), lambda i: (0, i),
                                   memory_space=pltpu.MemorySpace.VMEM),
        ),
        compiler_params=pltpu.CompilerParams(
            dimension_semantics=("parallel",),   # megacore sharding on v7x
        ),
        cost_estimate=cost,
    )(xT, w, b)

    return outT.T                               # back to (B, 2)


def init_params():
    """Deterministic init matching torch.nn.Linear(5, 2) parameter shapes.

    PyTorch stores weight as (out_features, in_features) = (2, 5); the kernel
    uses the transposed (5, 2) layout for its x @ W convention.
    """
    key = jax.random.PRNGKey(42)
    kw, kb = jax.random.split(key)
    bound = 1.0 / jnp.sqrt(5.0)   # torch default: U(-1/sqrt(fan_in), 1/sqrt(fan_in))
    w_t = jax.random.uniform(kw, (OUT_FEATURES, IN_FEATURES), jnp.float32,
                             -bound, bound)        # torch layout (2, 5)
    b = jax.random.uniform(kb, (OUT_FEATURES,), jnp.float32, -bound, bound)
    return w_t.T, b                                # (5, 2), (2,)


if __name__ == "__main__":
    # Batch chosen so the grid (tb=512) has more than one step; still tiny.
    B = 1024
    x = jax.random.normal(jax.random.PRNGKey(0), (B, IN_FEATURES),
                          dtype=jnp.float32)
    w, b = init_params()

    fwd = jax.jit(net_forward)
    out = fwd(x, w, b)
    jax.block_until_ready(out)

    # Sanity-check against a pure-JAX reference.
    ref = jnp.maximum(x @ w + b, 0.0)
    assert out.shape == (B, OUT_FEATURES)
    assert jnp.allclose(out, ref, atol=1e-5, rtol=1e-5)

    print("KERNEL_OK")
</pallas_src>

<mosaic_0001>
module attributes {stable_mosaic.version = 11 : i64} {
  func.func @_linear_relu_kernel(%arg0: i32, %arg1: memref<5x512xf32, #tpu.memory_space<vmem>>, %arg2: memref<5x2xf32, #tpu.memory_space<smem>>, %arg3: memref<2xf32, #tpu.memory_space<smem>>, %arg4: memref<2x512xf32, #tpu.memory_space<vmem>>) attributes {dimension_semantics = [#tpu.dimension_semantics<parallel>], iteration_bounds = array<i64: 2>, scalar_prefetch = 0 : i64, scratch_operands = 0 : i64, tpu.core_type = #tpu.core_type<tc>, window_params = [{transform_indices = @transform_0, window_bounds = array<i64: 5, 512>}, {transform_indices = @transform_1, window_bounds = array<i64: 5, 2>}, {transform_indices = @transform_2, window_bounds = array<i64: 2>}, {transform_indices = @transform_3, window_bounds = array<i64: 2, 512>}]} {
    %c0 = arith.constant 0 : index
    %c0_0 = arith.constant 0 : index
    %0 = vector.load %arg1[%c0, %c0_0] : memref<5x512xf32, #tpu.memory_space<vmem>>, vector<5x512xf32>
    %1 = vector.extract_strided_slice %0 {offsets = [0, 0], sizes = [1, 512], strides = [1, 1]} : vector<5x512xf32> to vector<1x512xf32>
    %c0_1 = arith.constant 0 : index
    %c0_2 = arith.constant 0 : index
    %2 = memref.load %arg2[%c0_1, %c0_2] : memref<5x2xf32, #tpu.memory_space<smem>>
    %3 = vector.broadcast %2 : f32 to vector<1x512xf32>
    %4 = arith.mulf %1, %3 : vector<1x512xf32>
    %5 = vector.extract_strided_slice %0 {offsets = [1, 0], sizes = [1, 512], strides = [1, 1]} : vector<5x512xf32> to vector<1x512xf32>
    %c1 = arith.constant 1 : index
    %c0_3 = arith.constant 0 : index
    %6 = memref.load %arg2[%c1, %c0_3] : memref<5x2xf32, #tpu.memory_space<smem>>
    %7 = vector.broadcast %6 : f32 to vector<1x512xf32>
    %8 = arith.mulf %5, %7 : vector<1x512xf32>
    %9 = arith.addf %4, %8 : vector<1x512xf32>
    %10 = vector.extract_strided_slice %0 {offsets = [2, 0], sizes = [1, 512], strides = [1, 1]} : vector<5x512xf32> to vector<1x512xf32>
    %c2 = arith.constant 2 : index
    %c0_4 = arith.constant 0 : index
    %11 = memref.load %arg2[%c2, %c0_4] : memref<5x2xf32, #tpu.memory_space<smem>>
    %12 = vector.broadcast %11 : f32 to vector<1x512xf32>
    %13 = arith.mulf %10, %12 : vector<1x512xf32>
    %14 = arith.addf %9, %13 : vector<1x512xf32>
    %15 = vector.extract_strided_slice %0 {offsets = [3, 0], sizes = [1, 512], strides = [1, 1]} : vector<5x512xf32> to vector<1x512xf32>
    %c3 = arith.constant 3 : index
    %c0_5 = arith.constant 0 : index
    %16 = memref.load %arg2[%c3, %c0_5] : memref<5x2xf32, #tpu.memory_space<smem>>
    %17 = vector.broadcast %16 : f32 to vector<1x512xf32>
    %18 = arith.mulf %15, %17 : vector<1x512xf32>
    %19 = arith.addf %14, %18 : vector<1x512xf32>
    %20 = vector.extract_strided_slice %0 {offsets = [4, 0], sizes = [1, 512], strides = [1, 1]} : vector<5x512xf32> to vector<1x512xf32>
    %c4 = arith.constant 4 : index
    %c0_6 = arith.constant 0 : index
    %21 = memref.load %arg2[%c4, %c0_6] : memref<5x2xf32, #tpu.memory_space<smem>>
    %22 = vector.broadcast %21 : f32 to vector<1x512xf32>
    %23 = arith.mulf %20, %22 : vector<1x512xf32>
    %24 = arith.addf %19, %23 : vector<1x512xf32>
    %c0_7 = arith.constant 0 : index
    %25 = memref.load %arg3[%c0_7] : memref<2xf32, #tpu.memory_space<smem>>
    %26 = vector.broadcast %25 : f32 to vector<1x512xf32>
    %27 = arith.addf %24, %26 : vector<1x512xf32>
    %28 = vector.extract_strided_slice %0 {offsets = [0, 0], sizes = [1, 512], strides = [1, 1]} : vector<5x512xf32> to vector<1x512xf32>
    %c0_8 = arith.constant 0 : index
    %c1_9 = arith.constant 1 : index
    %29 = memref.load %arg2[%c0_8, %c1_9] : memref<5x2xf32, #tpu.memory_space<smem>>
    %30 = vector.broadcast %29 : f32 to vector<1x512xf32>
    %31 = arith.mulf %28, %30 : vector<1x512xf32>
    %32 = vector.extract_strided_slice %0 {offsets = [1, 0], sizes = [1, 512], strides = [1, 1]} : vector<5x512xf32> to vector<1x512xf32>
    %c1_10 = arith.constant 1 : index
    %c1_11 = arith.constant 1 : index
    %33 = memref.load %arg2[%c1_10, %c1_11] : memref<5x2xf32, #tpu.memory_space<smem>>
    %34 = vector.broadcast %33 : f32 to vector<1x512xf32>
    %35 = arith.mulf %32, %34 : vector<1x512xf32>
    %36 = arith.addf %31, %35 : vector<1x512xf32>
    %37 = vector.extract_strided_slice %0 {offsets = [2, 0], sizes = [1, 512], strides = [1, 1]} : vector<5x512xf32> to vector<1x512xf32>
    %c2_12 = arith.constant 2 : index
    %c1_13 = arith.constant 1 : index
    %38 = memref.load %arg2[%c2_12, %c1_13] : memref<5x2xf32, #tpu.memory_space<smem>>
    %39 = vector.broadcast %38 : f32 to vector<1x512xf32>
    %40 = arith.mulf %37, %39 : vector<1x512xf32>
    %41 = arith.addf %36, %40 : vector<1x512xf32>
    %42 = vector.extract_strided_slice %0 {offsets = [3, 0], sizes = [1, 512], strides = [1, 1]} : vector<5x512xf32> to vector<1x512xf32>
    %c3_14 = arith.constant 3 : index
    %c1_15 = arith.constant 1 : index
    %43 = memref.load %arg2[%c3_14, %c1_15] : memref<5x2xf32, #tpu.memory_space<smem>>
    %44 = vector.broadcast %43 : f32 to vector<1x512xf32>
    %45 = arith.mulf %42, %44 : vector<1x512xf32>
    %46 = arith.addf %41, %45 : vector<1x512xf32>
    %47 = vector.extract_strided_slice %0 {offsets = [4, 0], sizes = [1, 512], strides = [1, 1]} : vector<5x512xf32> to vector<1x512xf32>
    %c4_16 = arith.constant 4 : index
    %c1_17 = arith.constant 1 : index
    %48 = memref.load %arg2[%c4_16, %c1_17] : memref<5x2xf32, #tpu.memory_space<smem>>
    %49 = vector.broadcast %48 : f32 to vector<1x512xf32>
    %50 = arith.mulf %47, %49 : vector<1x512xf32>
    %51 = arith.addf %46, %50 : vector<1x512xf32>
    %c1_18 = arith.constant 1 : index
    %52 = memref.load %arg3[%c1_18] : memref<2xf32, #tpu.memory_space<smem>>
    %53 = vector.broadcast %52 : f32 to vector<1x512xf32>
    %54 = arith.addf %51, %53 : vector<1x512xf32>
    %55 = tpu.concatenate %27, %54 in 0 : vector<1x512xf32>, vector<1x512xf32> -> vector<2x512xf32>
    %cst = arith.constant 0.000000e+00 : f32
    %56 = vector.broadcast %cst : f32 to vector<2x512xf32>
    %57 = arith.maximumf %55, %56 : vector<2x512xf32>
    %c0_19 = arith.constant 0 : index
    %c0_20 = arith.constant 0 : index
    %58 = vector.load %arg4[%c0_19, %c0_20] : memref<2x512xf32, #tpu.memory_space<vmem>>, vector<2x512xf32>
    tpu.vector_store %arg4[%c0_19, %c0_20], %57 {strides = array<i32>} : memref<2x512xf32, #tpu.memory_space<vmem>>, vector<2x512xf32>,
    return
  }
  func.func @transform_0(%arg0: i32) -> (i32, i32) {
    %c0_i32 = arith.constant 0 : i32
    %c0_i32_0 = arith.constant 0 : i32
    return %c0_i32, %arg0 : i32, i32
  }
  func.func @transform_1(%arg0: i32) -> (i32, i32) {
    %c0_i32 = arith.constant 0 : i32
    %c0_i32_0 = arith.constant 0 : i32
    %c0_i32_1 = arith.constant 0 : i32
    return %c0_i32, %c0_i32_0 : i32, i32
  }
  func.func @transform_2(%arg0: i32) -> i32 {
    %c0_i32 = arith.constant 0 : i32
    %c0_i32_0 = arith.constant 0 : i32
    return %c0_i32 : i32
  }
  func.func @transform_3(%arg0: i32) -> (i32, i32) {
    %c0_i32 = arith.constant 0 : i32
    %c0_i32_0 = arith.constant 0 : i32
    return %c0_i32, %arg0 : i32, i32
  }
}

</mosaic_0001>

<llo_original>
// kernel: net_forward.1
$region0: #{net_forward.1}
  #allocation0 [shape = 'u32[]', space=smem, size = 0x4, offset = 0x4, fixed_abs, tag = 'smem constant byte address 0x4 - core index']
  #allocation1 [shape = 'u32[72,128]{1,0:T(1,128)}', space=vmem, size = 0x9000, scoped, tag = 'internal scratch']
  %s0 = inlined_call_operand.hbm [shape: f32[5,1024], index: 0, kind: input, shape index: {}]
  %s1 = inlined_call_operand.vmem [shape: f32[5,2], index: 1, kind: input, shape index: {}]
  %s2 = inlined_call_operand.vmem [shape: f32[2], index: 2, kind: input, shape index: {}]
  %s3 = inlined_call_operand.hbm [shape: f32[2,1024], index: 3, kind: output, shape index: {}]
  %s4 = sld [smem:[#allocation0]]
  $region57: #{net_forward.1} parent=0
    _
  %s6 = ssub.s32 1, %s4
  %s7 = scalar_select 0, %s6, %s4
  $region1: #{net_forward.1} parent=0
    #allocation2 [shape = 'u8[32768]{0}', space=vmem, size = 0x8000, scoped, tag = 'input window, operand 0']
    #allocation3 [shape = 's32[2]{0}', space=sflag, size = 0x8, scoped, tag = 'scoped memory for net_forward.1']
    #allocation4 [shape = 's32[2]{0}', space=sflag, size = 0x8, scoped, tag = 'scoped memory for net_forward.1']
    #allocation5 [shape = 's32[2]{0}', space=sflag, size = 0x8, scoped, tag = 'scoped memory for net_forward.1']
    #allocation6 [shape = 'u8[4096]{0}', space=smem, size = 0x1000, scoped, tag = 'input window, operand 1, single buffered']
    #allocation7 [shape = 'u8[512]{0}', space=smem, size = 0x200, scoped, tag = 'input window, operand 2, single buffered']
    #allocation8 [shape = 's32[1]{0}', space=sflag, size = 0x4, scoped, tag = 'scoped memory for net_forward.1']
    #allocation9 [shape = 'u8[8192]{0}', space=vmem, size = 0x2000, scoped, tag = 'output window, operand 0']
    %8 = vsyncpa [#allocation3], 0
    %s9 = scalar_lea.sflag [#allocation3], 1
    %10 = vsyncpa %s9, 0
    %11 = vsyncpa [#allocation5], 0
    %12 = vsyncpa [#allocation8], 0
    %13 = vsyncpa [#allocation4], 0
    %s14 = scalar_lea.sflag [#allocation4], 1
    %15 = vsyncpa %s14, 0
    loop: start=0, step=1, limit=4
    $region2: #{net_forward.1} parent=1 // loop_pre_header
      _
    $region3: #{net_forward.1} parent=1 // loop_header
      %s17 = sphi 0, %s21
      %p18 = scmp.ge.s32.totalorder %s17, 4
      %s27 = sphi 0, %s29
      %s30 = sphi 0, %s27
      %s31 = sphi 0, %s30
      %s47 = sphi 0, %s31
      %s51 = sphi 0, %s51
      %s53 = sphi 0, %s51
      %s54 = sphi 0, %s53
      %s68 = sphi 0, %s54
      %s72 = sphi 0, %s72
      %s74 = sphi 0, %s72
      %s75 = sphi 0, %s74
      %s89 = sphi 0, %s75
      %s95 = sphi 0, %s97
      %s98 = sphi 0, %s95
      %s99 = sphi 0, %s98
      %s115 = sphi 0, %s99
    $region4: #{net_forward.1} parent=1 // loop_header_branch
      %20 = sbr.rel (%p18) target = $region8
    $region5: #{net_forward.1} parent=1 // loop_body
      %s22 = ssub.s32 %s17, 1
      %s23 = ssub.s32 %s17, 2
      %s24 = sadd.s32 %s17, 1
      %s25 = ssub.s32 %s17, %s24
      %p26 = scmp.eq.s32.totalorder %s25, 0
      %s28 = sadd.s32 %s27, 1
      %s29 = scalar_select %p26, %s27, %s28
      %p32 = pneg %p26
      %p33 = scmp.eq.s32.totalorder %s17, 1
      %p34 = por %p32, %p33
      %p35 = scmp.ne.s32.totalorder %s27, %s30
      %p36 = scmp.eq.s32.totalorder %s17, 0
      %p37 = por %p35, %p36
      %p38 = scmp.ne.s32.totalorder %s27, %s30
      %p39 = scmp.eq.s32.totalorder %s22, 1
      %p40 = por %p38, %p39
      %p41 = scmp.ne.s32.totalorder %s30, %s31
      %p42 = scmp.eq.s32.totalorder %s22, 0
      %p43 = por %p41, %p42
      %p44 = scmp.ne.s32.totalorder %s30, %s31
      %p45 = scmp.eq.s32.totalorder %s23, 1
      %p46 = por %p44, %p45
      %p48 = scmp.ne.s32.totalorder %s31, %s47
      %p49 = scmp.eq.s32.totalorder %s23, 0
      %p50 = por %p48, %p49
      %s52 = sadd.s32 %s51, 1
      %p55 = scmp.eq.s32.totalorder %s17, 1
      %p56 = scmp.ne.s32.totalorder %s51, %s53
      %p57 = scmp.eq.s32.totalorder %s17, 0
      %p58 = por %p56, %p57
      %p59 = scmp.ne.s32.totalorder %s51, %s53
      %p60 = scmp.eq.s32.totalorder %s22, 1
      %p61 = por %p59, %p60
      %p62 = scmp.ne.s32.totalorder %s53, %s54
      %p63 = scmp.eq.s32.totalorder %s22, 0
      %p64 = por %p62, %p63
      %p65 = scmp.ne.s32.totalorder %s53, %s54
      %p66 = scmp.eq.s32.totalorder %s23, 1
      %p67 = por %p65, %p66
      %p69 = scmp.ne.s32.totalorder %s54, %s68
      %p70 = scmp.eq.s32.totalorder %s23, 0
      %p71 = por %p69, %p70
      %s73 = sadd.s32 %s72, 1
      %p76 = scmp.eq.s32.totalorder %s17, 1
      %p77 = scmp.ne.s32.totalorder %s72, %s74
      %p78 = scmp.eq.s32.totalorder %s17, 0
      %p79 = por %p77, %p78
      %p80 = scmp.ne.s32.totalorder %s72, %s74
      %p81 = scmp.eq.s32.totalorder %s22, 1
      %p82 = por %p80, %p81
      %p83 = scmp.ne.s32.totalorder %s74, %s75
      %p84 = scmp.eq.s32.totalorder %s22, 0
      %p85 = por %p83, %p84
      %p86 = scmp.ne.s32.totalorder %s74, %s75
      %p87 = scmp.eq.s32.totalorder %s23, 1
      %p88 = por %p86, %p87
      %p90 = scmp.ne.s32.totalorder %s75, %s89
      %p91 = scmp.eq.s32.totalorder %s23, 0
      %p92 = por %p90, %p91
      %s93 = ssub.s32 %s17, %s24
      %p94 = scmp.eq.s32.totalorder %s93, 0
      %s96 = sadd.s32 %s95, 1
      %s97 = scalar_select %p94, %s95, %s96
      %p100 = pneg %p94
      %p101 = scmp.eq.s32.totalorder %s17, 1
      %p102 = por %p100, %p101
      %p103 = scmp.ne.s32.totalorder %s95, %s98
      %p104 = scmp.eq.s32.totalorder %s17, 0
      %p105 = por %p103, %p104
      %p106 = scmp.ne.s32.totalorder %s95, %s98
      %p107 = scmp.eq.s32.totalorder %s22, 1
      %p108 = por %p106, %p107
      %p109 = scmp.ne.s32.totalorder %s98, %s99
      %p110 = scmp.eq.s32.totalorder %s22, 0
      %p111 = por %p109, %p110
      %p112 = scmp.ne.s32.totalorder %s98, %s99
      %p113 = scmp.eq.s32.totalorder %s23, 1
      %p114 = por %p112, %p113
      %p116 = scmp.ne.s32.totalorder %s99, %s115
      %p117 = scmp.eq.s32.totalorder %s23, 0
      %p118 = por %p116, %p117
      %p119 = scmp.le.s32.totalorder 1, %s17
      %p120 = scmp.lt.s32.totalorder %s17, 3
      %p121 = pnand %p119, %p120
      %p122 = pneg %p121
      // Predicated region
      $region9: #{net_forward.1} parent=5 // pred_check
        _
      $region10: #{net_forward.1} parent=5 // pred_check_branch
        %124 = sbr.rel (%p121) target = $region12
      $region11: #{net_forward.1} parent=5 // pred_region
        %s125 = ssub.s32 %s17, 1
        // Predicated region
        $region13: #{net_forward.1} parent=11 // pred_check
          %p126 = pneg %p64
        $region14: #{net_forward.1} parent=11 // pred_check_branch
          %128 = sbr.rel (%p126) target = $region16
        $region15: #{net_forward.1} parent=11 // pred_region
          %130 = vsyncadd [#allocation5], 0
          %s132 = sshll.u32 %s1, 4
          %s133 = int_to_ptr.vmem [resolvable:$true] %s132
          %135 = dma.vmem_to_smem %s133, 128, [#allocation6], [#allocation5]
        $region16: #{net_forward.1} parent=11 // pred_fallthru
          _
        // Predicated region
        $region17: #{net_forward.1} parent=11 // pred_check
          %p136 = pneg %p85
        $region18: #{net_forward.1} parent=11 // pred_check_branch
          %138 = sbr.rel (%p136) target = $region20
        $region19: #{net_forward.1} parent=11 // pred_region
          %140 = vsyncadd [#allocation8], 0
          %s142 = sshll.u32 %s2, 4
          %s143 = int_to_ptr.vmem [resolvable:$true] %s142
          %145 = dma.vmem_to_smem %s143, 16, [#allocation7], [#allocation8]
        $region20: #{net_forward.1} parent=11 // pred_fallthru
          _
      $region12: #{net_forward.1} parent=5 // pred_fallthru
        _
      %p146 = scmp.lt.s32.totalorder %s17, 2
      // Predicated region
      $region21: #{net_forward.1} parent=5 // pred_check
        %p147 = pneg %p146
      $region22: #{net_forward.1} parent=5 // pred_check_branch
        %149 = sbr.rel (%p147) target = $region24
      $region23: #{net_forward.1} parent=5 // pred_region
        // Predicated region
        $region25: #{net_forward.1} parent=23 // pred_check
          %p150 = pneg %p37
        $region26: #{net_forward.1} parent=23 // pred_check_branch
          %152 = sbr.rel (%p150) target = $region28
        $region27: #{net_forward.1} parent=23 // pred_region
          %s153 = sand.u32 %s27, 1
          %s154 = scalar_lea.sflag [#allocation3], %s153
          %s155 = sand.u32 %s27, 1
          %s156 = smul.addr %s155, 32
          %s157 = scalar_lea.vmem [#allocation2], %s156
          %s158 = smul.u32 4, %s17
          %160 = vsyncadd %s154, 0
          %s161 = smul.addr %s158, 8
          %s162 = scalar_lea.hbm %s0, %s161
          %s164 = sshll.u32 %s162, 4
          %s165 = int_to_ptr.hbm [resolvable:$true] %s164
          %s166 = sshll.u32 %s157, 4
          %s167 = int_to_ptr.vmem [resolvable:$true] %s166
          %169 = dma.hbm_to_vmem [thread:$0]  %s165, 512, %s167, %s154
        $region28: #{net_forward.1} parent=23 // pred_fallthru
          _
      $region24: #{net_forward.1} parent=5 // pred_fallthru
        _
      %p170 = scmp.le.s32.totalorder 1, %s17
      %p171 = scmp.lt.s32.totalorder %s17, 3
      %p172 = pnand %p170, %p171
      %p173 = pneg %p172
      // Predicated region
      $region29: #{net_forward.1} parent=5 // pred_check
        _
      $region30: #{net_forward.1} parent=5 // pred_check_branch
        %175 = sbr.rel (%p172) target = $region32
      $region31: #{net_forward.1} parent=5 // pred_region
        %s176 = ssub.s32 %s17, 1
        %s177 = sand.u32 %s30, 1
        %s178 = scalar_lea.sflag [#allocation3], %s177
        %s179 = sand.u32 %s30, 1
        %s180 = smul.addr %s179, 32
        %s181 = scalar_lea.vmem [#allocation2], %s180
        // Predicated region
        $region33: #{net_forward.1} parent=31 // pred_check
          %p182 = pneg %p43
        $region34: #{net_forward.1} parent=31 // pred_check_branch
          %184 = sbr.rel (%p182) target = $region36
        $region35: #{net_forward.1} parent=31 // pred_region
          %186 = dma.done %s178, 512
        $region36: #{net_forward.1} parent=31 // pred_fallthru
          _
        // Predicated region
        $region37: #{net_forward.1} parent=31 // pred_check
          %p187 = pneg %p64
        $region38: #{net_forward.1} parent=31 // pred_check_branch
          %189 = sbr.rel (%p187) target = $region40
        $region39: #{net_forward.1} parent=31 // pred_region
          %191 = dma.done [#allocation5], 128
        $region40: #{net_forward.1} parent=31 // pred_fallthru
          _
        // Predicated region
        $region41: #{net_forward.1} parent=31 // pred_check
          %p192 = pneg %p85
        $region42: #{net_forward.1} parent=31 // pred_check_branch
          %194 = sbr.rel (%p192) target = $region44
        $region43: #{net_forward.1} parent=31 // pred_region
          %196 = dma.done [#allocation8], 16
        $region44: #{net_forward.1} parent=31 // pred_fallthru
          _
        %197 = sfence
        %s198 = sand.u32 %s30, 1
        %s199 = scalar_lea.sflag [#allocation3], %s198
        %s200 = sand.u32 %s30, 1
        %s201 = smul.addr %s200, 32
        %s202 = scalar_lea.vmem [#allocation2], %s201
        %p203 = pneg %p43
        %p204 = pneg %p40
        %p205 = pneg %p64
        %p206 = pneg %p61
        %p207 = pneg %p85
        %p208 = pneg %p82
        %p209 = pneg %p111
        %p210 = pneg %p108
        %s211 = sand.u32 %s98, 1
        %s212 = scalar_lea.sflag [#allocation4], %s211
        %s213 = sand.u32 %s98, 1
        %s214 = smul.addr %s213, 8
        %s215 = scalar_lea.vmem [#allocation9], %s214
        %s216 = smul.u32 4, %s22
        %s217 = smul.u32 4, %s22
        %v218 = vld [vmem:[%s181] sm:$0x1f]
        %v219 = vld [vmem:[%s181 + $0x8] sm:$0x1f]
        %v220 = vld [vmem:[%s181 + $0x10] sm:$0x1f]
        %v221 = vld [vmem:[%s181 + $0x18] sm:$0x1f]
        %s222 = sld [smem:[#allocation6]]
        %v223 = vstv %s222
        %v224 = vmul.f32 %v218, %v223
        %v225 = vmul.f32 %v219, %v223
        %v226 = vmul.f32 %v220, %v223
        %v227 = vmul.f32 %v221, %v223
        %s228 = sld [smem:[#allocation6 + $0x80]]
        %v229 = vstv %s228
        %v230 = vmul.f32 %v218, %v229
        %v231 = vmul.f32 %v219, %v229
        %v232 = vmul.f32 %v220, %v229
        %v233 = vmul.f32 %v221, %v229
        %v238 = vrot.slane %v230, 1
        %v239 = vrot.slane %v231, 1
        %v240 = vrot.slane %v232, 1
        %v241 = vrot.slane %v233, 1
        %v246 = vadd.f32 %v224, %v238
        %v247 = vadd.f32 %v225, %v239
        %v248 = vadd.f32 %v226, %v240
        %v249 = vadd.f32 %v227, %v241
        %s250 = sld [smem:[#allocation6 + $0x100]]
        %v251 = vstv %s250
        %v252 = vmul.f32 %v218, %v251
        %v253 = vmul.f32 %v219, %v251
        %v254 = vmul.f32 %v220, %v251
        %v255 = vmul.f32 %v221, %v251
        %v260 = vrot.slane %v252, 2
        %v261 = vrot.slane %v253, 2
        %v262 = vrot.slane %v254, 2
        %v263 = vrot.slane %v255, 2
        %v268 = vadd.f32 %v246, %v260
        %v269 = vadd.f32 %v247, %v261
        %v270 = vadd.f32 %v248, %v262
        %v271 = vadd.f32 %v249, %v263
        %s272 = sld [smem:[#allocation6 + $0x180]]
        %v273 = vstv %s272
        %v274 = vmul.f32 %v218, %v273
        %v275 = vmul.f32 %v219, %v273
        %v276 = vmul.f32 %v220, %v273
        %v277 = vmul.f32 %v221, %v273
        %v282 = vrot.slane %v274, 3
        %v283 = vrot.slane %v275, 3
        %v284 = vrot.slane %v276, 3
        %v285 = vrot.slane %v277, 3
        %v290 = vadd.f32 %v268, %v282
        %v291 = vadd.f32 %v269, %v283
        %v292 = vadd.f32 %v270, %v284
        %v293 = vadd.f32 %v271, %v285
        %s294 = sld [smem:[#allocation6 + $0x200]]
        %v295 = vstv %s294
        %v296 = vmul.f32 %v218, %v295
        %v297 = vmul.f32 %v219, %v295
        %v298 = vmul.f32 %v220, %v295
        %v299 = vmul.f32 %v221, %v295
        %v304 = vrot.slane %v296, 4
        %v305 = vrot.slane %v297, 4
        %v306 = vrot.slane %v298, 4
        %v307 = vrot.slane %v299, 4
        %v312 = vadd.f32 %v290, %v304
        %v313 = vadd.f32 %v291, %v305
        %v314 = vadd.f32 %v292, %v306
        %v315 = vadd.f32 %v293, %v307
        %s316 = sld [smem:[#allocation7]]
        %v317 = vstv %s316
        %v318 = vadd.f32 %v312, %v317
        %v319 = vadd.f32 %v313, %v317
        %v320 = vadd.f32 %v314, %v317
        %v321 = vadd.f32 %v315, %v317
        %s322 = sld [smem:[#allocation6 + $0x1]]
        %v323 = vstv %s322
        %v324 = vmul.f32 %v218, %v323
        %v325 = vmul.f32 %v219, %v323
        %v326 = vmul.f32 %v220, %v323
        %v327 = vmul.f32 %v221, %v323
        %s328 = sld [smem:[#allocation6 + $0x81]]
        %v329 = vstv %s328
        %v330 = vmul.f32 %v218, %v329
        %v331 = vmul.f32 %v219, %v329
        %v332 = vmul.f32 %v220, %v329
        %v333 = vmul.f32 %v221, %v329
        %v338 = vrot.slane %v330, 1
        %v339 = vrot.slane %v331, 1
        %v340 = vrot.slane %v332, 1
        %v341 = vrot.slane %v333, 1
        %v346 = vadd.f32 %v324, %v338
        %v347 = vadd.f32 %v325, %v339
        %v348 = vadd.f32 %v326, %v340
        %v349 = vadd.f32 %v327, %v341
        %s350 = sld [smem:[#allocation6 + $0x101]]
        %v351 = vstv %s350
        %v352 = vmul.f32 %v218, %v351
        %v353 = vmul.f32 %v219, %v351
        %v354 = vmul.f32 %v220, %v351
        %v355 = vmul.f32 %v221, %v351
        %v360 = vrot.slane %v352, 2
        %v361 = vrot.slane %v353, 2
        %v362 = vrot.slane %v354, 2
        %v363 = vrot.slane %v355, 2
        %v368 = vadd.f32 %v346, %v360
        %v369 = vadd.f32 %v347, %v361
        %v370 = vadd.f32 %v348, %v362
        %v371 = vadd.f32 %v349, %v363
        %s372 = sld [smem:[#allocation6 + $0x181]]
        %v373 = vstv %s372
        %v374 = vmul.f32 %v218, %v373
        %v375 = vmul.f32 %v219, %v373
        %v376 = vmul.f32 %v220, %v373
        %v377 = vmul.f32 %v221, %v373
        %v382 = vrot.slane %v374, 3
        %v383 = vrot.slane %v375, 3
        %v384 = vrot.slane %v376, 3
        %v385 = vrot.slane %v377, 3
        %v390 = vadd.f32 %v368, %v382
        %v391 = vadd.f32 %v369, %v383
        %v392 = vadd.f32 %v370, %v384
        %v393 = vadd.f32 %v371, %v385
        %s394 = sld [smem:[#allocation6 + $0x201]]
        %v395 = vstv %s394
        %v396 = vmul.f32 %v218, %v395
        %v397 = vmul.f32 %v219, %v395
        %v398 = vmul.f32 %v220, %v395
        %v399 = vmul.f32 %v221, %v395
        %v404 = vrot.slane %v396, 4
        %v405 = vrot.slane %v397, 4
        %v406 = vrot.slane %v398, 4
        %v407 = vrot.slane %v399, 4
        %v412 = vadd.f32 %v390, %v404
        %v413 = vadd.f32 %v391, %v405
        %v414 = vadd.f32 %v392, %v406
        %v415 = vadd.f32 %v393, %v407
        %s416 = sld [smem:[#allocation7 + $0x1]]
        %v417 = vstv %s416
        %v418 = vadd.f32 %v412, %v417
        %v419 = vadd.f32 %v413, %v417
        %v420 = vadd.f32 %v414, %v417
        %v421 = vadd.f32 %v415, %v417
        %v426 = vrot.slane %v418, 7
        %v427 = vrot.slane %v419, 7
        %v428 = vrot.slane %v420, 7
        %v429 = vrot.slane %v421, 7
        %vm434 = vcmask 1040384
        %v435 = vsel %vm434, %v318, %v426
        %v436 = vsel %vm434, %v319, %v427
        %v437 = vsel %vm434, %v320, %v428
        %v438 = vsel %vm434, %v321, %v429
        %v439 = vmax.f32 %v435, 0.0
        %v440 = vmax.f32 %v436, 0.0
        %v441 = vmax.f32 %v437, 0.0
        %v442 = vmax.f32 %v438, 0.0
        %v447 = vrot.slane %v440, 6
        %v448 = vrot.slane %v441, 4
        %v449 = vrot.slane %v442, 2
        %vm450 = vcmask 1041408
        %v451 = vsel %vm450, %v439, %v447
        %vm452 = vcmask 1045508
        %v453 = vsel %vm452, %v448, %v449
        %vm454 = vcmask 1043456
        %v455 = vsel %vm454, %v451, %v453
        %457 = vst [vmem:[%s215] sm:$0xff] %v455
        %s458 = sand.u32 %s98, 1
        %s459 = scalar_lea.sflag [#allocation4], %s458
        %s460 = sand.u32 %s98, 1
        %s461 = smul.addr %s460, 8
        %s462 = scalar_lea.vmem [#allocation9], %s461
        // Predicated region
        $region45: #{net_forward.1} parent=31 // pred_check
          %p463 = pneg %p108
        $region46: #{net_forward.1} parent=31 // pred_check_branch
          %465 = sbr.rel (%p463) target = $region48
        $region47: #{net_forward.1} parent=31 // pred_region
          %s466 = smul.u32 4, %s22
          %468 = vsyncadd %s459, 0
          %s469 = smul.addr %s466, 2
          %s470 = scalar_lea.hbm %s3, %s469
          %s472 = sshll.u32 %s462, 4
          %s473 = int_to_ptr.vmem [resolvable:$true] %s472
          %s474 = sshll.u32 %s470, 4
          %s475 = int_to_ptr.hbm [resolvable:$true] %s474
          %477 = dma.vmem_to_hbm [thread:$0]  %s473, 128, %s475, %s459
        $region48: #{net_forward.1} parent=31 // pred_fallthru
          _
      $region32: #{net_forward.1} parent=5 // pred_fallthru
        _
      %p478 = scmp.le.s32.totalorder 2, %s17
      // Predicated region
      $region49: #{net_forward.1} parent=5 // pred_check
        %p479 = pneg %p478
      $region50: #{net_forward.1} parent=5 // pred_check_branch
        %481 = sbr.rel (%p479) target = $region52
      $region51: #{net_forward.1} parent=5 // pred_region
        %s482 = ssub.s32 %s17, 2
        // Predicated region
        $region53: #{net_forward.1} parent=51 // pred_check
          %p483 = pneg %p114
        $region54: #{net_forward.1} parent=51 // pred_check_branch
          %485 = sbr.rel (%p483) target = $region56
        $region55: #{net_forward.1} parent=51 // pred_region
          %s486 = sand.u32 %s99, 1
          %s487 = scalar_lea.sflag [#allocation4], %s486
          %s488 = sand.u32 %s99, 1
          %s489 = smul.addr %s488, 8
          %s490 = scalar_lea.vmem [#allocation9], %s489
          %492 = dma.done %s487, 128
        $region56: #{net_forward.1} parent=51 // pred_fallthru
          _
      $region52: #{net_forward.1} parent=5 // pred_fallthru
        _
    $region6: #{net_forward.1} parent=1 // loop_footer
      %s21 = sadd.s32 1, %s17
    $region7: #{net_forward.1} parent=1 // loop_footer_branch
      %16 = sbr.rel target = $region3
    $region8: #{net_forward.1} parent=1 // loop_exit
      _
    %493 = vsyncpa [#allocation3], 1
    %s494 = scalar_lea.sflag [#allocation3], 1
    %495 = vsyncpa %s494, 1
    %496 = vsyncpa [#allocation4], 1
    %s497 = scalar_lea.sflag [#allocation4], 1
    %498 = vsyncpa %s497, 1
    %499 = vsyncpa [#allocation5], 1
    %s500 = scalar_lea.sflag [#allocation5], 1
    %501 = vsyncpa %s500, 1
    %502 = vsyncpa [#allocation8], 1

</llo_original>
